<compile_context>
chip_gen: v7x
topology: tpu7x:2x2x1
jax: 0.10.0
libtpu: 0.0.40
codegen_flags: <defaults>
</compile_context>

<pallas_src>
import math

import jax
import jax.numpy as jnp
from jax import lax
from jax.experimental import pallas as pl
from jax.experimental.pallas import tpu as pltpu


def _cdiv(a: int, b: int) -> int:
    return -(-a // b)


def _round_up(x: int, m: int) -> int:
    return _cdiv(x, m) * m


def _uniform_bits_for(dtype) -> int:
    """Number of random bits used to build the uniform value.

    Matched to the target dtype's significand so the largest generated value
    is exactly representable and strictly < 1.0 after the final cast.
    """
    d = jnp.dtype(dtype)
    if d == jnp.dtype(jnp.bfloat16):
        return 8          # multiples of 1/256, exact in bf16
    if d == jnp.dtype(jnp.float16):
        return 11         # multiples of 1/2048, exact in fp16
    return 24             # float32: full 24-bit significand


def _random_image_kernel(seed_ref, o_ref):
    """Fill o_ref with uniform [0, 1) values via a counter-based hash PRNG."""
    rows, cols = o_ref.shape
    pid = pl.program_id(0)

    # Unique 32-bit counter per output element (flattened global index).
    row_ids = lax.broadcasted_iota(jnp.int32, (rows, cols), 0).astype(jnp.uint32)
    col_ids = lax.broadcasted_iota(jnp.int32, (rows, cols), 1).astype(jnp.uint32)
    base_row = (pid * rows).astype(jnp.uint32)
    idx = (row_ids + base_row) * jnp.uint32(cols) + col_ids

    # Mix the user seed in with a golden-ratio multiply so adjacent seeds give
    # unrelated streams (no tile overlap between seed s and seed s+1).
    seed = seed_ref[0].astype(jnp.uint32) * jnp.uint32(0x9E3779B9)

    # "lowbias32"-style integer finalizer (splitmix/murmur family).
    x = idx ^ seed
    x = x ^ (x >> jnp.uint32(16))
    x = x * jnp.uint32(0x7FEB352D)
    x = x ^ (x >> jnp.uint32(15))
    x = x * jnp.uint32(0x846CA68B)
    x = x ^ (x >> jnp.uint32(16))

    # Top bits -> uniform float in [0, 1), built with a dtype-matched number of
    # bits so the final cast never rounds to 1.0.
    nbits = _uniform_bits_for(o_ref.dtype)
    hi = (x >> jnp.uint32(32 - nbits)).astype(jnp.int32)   # in [0, 2**nbits)
    u = hi.astype(jnp.float32) * jnp.float32(2.0 ** (-nbits))
    o_ref[...] = u.astype(o_ref.dtype)


def random_image(image: jax.Array, seed=0) -> jax.Array:
    """JAX/Pallas equivalent of RandomImage().forward(image).

    Returns uniform [0, 1) noise with the same shape/dtype as `image`.
    The input values are never read (only its shape/dtype are used).
    """
    shape = image.shape
    dtype = image.dtype
    total = max(1, math.prod(shape))
    itemsize = jnp.dtype(dtype).itemsize

    # Sublane granularity depends on dtype packing: f32 -> 8, bf16 -> 16, i8 -> 32.
    sublane = max(8, 32 // max(1, itemsize))

    # Lane-dense working view: as wide as possible (multiple of 128) while still
    # covering at least one full (sublane, width) tile of real data.
    width = 128
    for cand in (4096, 2048, 1024, 512, 256, 128):
        if total >= cand * sublane:
            width = cand
            break

    rows = _round_up(_cdiv(total, width), sublane)

    # Target ~4 MiB output blocks: big enough to amortize per-grid-step overhead
    # and reach the HBM-write roofline, small enough that the double-buffered
    # output (2 blocks) stays well inside v7x's 32 MiB scoped VMEM.
    target_block_bytes = 4 * 1024 * 1024
    max_rows_per_block = max(
        sublane, (target_block_bytes // (width * itemsize)) // sublane * sublane
    )
    num_blocks = _cdiv(rows, max_rows_per_block)
    rows_per_block = _round_up(_cdiv(rows, num_blocks), sublane)
    rows = num_blocks * rows_per_block          # pad to whole-block granularity

    seed_arr = jnp.atleast_1d(jnp.asarray(seed, dtype=jnp.int32))

    out2d = pl.pallas_call(
        _random_image_kernel,
        out_shape=jax.ShapeDtypeStruct((rows, width), dtype),
        grid_spec=pltpu.PrefetchScalarGridSpec(
            num_scalar_prefetch=1,              # seed lives in SMEM
            grid=(num_blocks,),
            in_specs=[],                        # the input image is never read
            out_specs=pl.BlockSpec((rows_per_block, width), lambda i, seed: (i, 0)),
        ),
        compiler_params=pltpu.CompilerParams(
            dimension_semantics=("parallel",),  # blocks are independent -> megacore
        ),
        cost_estimate=pl.CostEstimate(
            flops=16 * rows * width,            # ~hash ops per element
            transcendentals=0,
            bytes_accessed=rows * width * itemsize,
        ),
    )(seed_arr)

    flat = out2d.reshape(-1)[:total]
    return flat.reshape(shape)


if __name__ == "__main__":
    key = jax.random.PRNGKey(0)
    # NCHW, matching the PyTorch convention: batch=2, channels=4, 16x16 spatial.
    x = jax.random.normal(key, (2, 4, 16, 16), dtype=jnp.float32)

    y = random_image(x, seed=0)
    y = jax.block_until_ready(y)

    assert y.shape == x.shape, (y.shape, x.shape)
    assert y.dtype == x.dtype, (y.dtype, x.dtype)
    assert bool(jnp.all(y >= 0.0)) and bool(jnp.all(y < 1.0)), "values outside [0, 1)"
    # Sanity: output should not be constant and should be deterministic per seed.
    assert float(jnp.std(y)) > 0.0
    y2 = jax.block_until_ready(random_image(x, seed=0))
    assert bool(jnp.all(y == y2)), "same seed must reproduce the same noise"

    print("KERNEL_OK")
</pallas_src>

<mosaic_0001>
module attributes {stable_mosaic.version = 11 : i64} {
  func.func @_random_image_kernel(%arg0: i32, %arg1: memref<1xi32, #tpu.memory_space<smem>>, %arg2: memref<8x256xf32, #tpu.memory_space<vmem>>) attributes {dimension_semantics = [#tpu.dimension_semantics<parallel>], iteration_bounds = array<i64: 1>, scalar_prefetch = 1 : i64, scratch_operands = 0 : i64, tpu.core_type = #tpu.core_type<tc>, window_params = [{transform_indices = @transform_0, window_bounds = array<i64: 8, 256>}]} {
    %0 = tpu.iota {dimensions = array<i32: 0>} : vector<8x256xi32>
    %1 = tpu.iota {dimensions = array<i32: 1>} : vector<8x256xi32>
    %c8_i32 = arith.constant 8 : i32
    %2 = arith.muli %arg0, %c8_i32 : i32
    %3 = vector.broadcast %2 : i32 to vector<8x256xi32>
    %4 = arith.addi %0, %3 : vector<8x256xi32>
    %c256_i32 = arith.constant 256 : i32
    %5 = vector.broadcast %c256_i32 : i32 to vector<8x256xi32>
    %6 = arith.muli %4, %5 : vector<8x256xi32>
    %7 = arith.addi %6, %1 : vector<8x256xi32>
    %c0 = arith.constant 0 : index
    %8 = memref.load %arg1[%c0] : memref<1xi32, #tpu.memory_space<smem>>
    %c-1640531527_i32 = arith.constant -1640531527 : i32
    %9 = arith.muli %8, %c-1640531527_i32 : i32
    %10 = vector.broadcast %9 : i32 to vector<8x256xi32>
    %11 = arith.xori %7, %10 : vector<8x256xi32>
    %c16_i32 = arith.constant 16 : i32
    %12 = vector.broadcast %c16_i32 : i32 to vector<8x256xi32>
    %13 = arith.shrui %11, %12 : vector<8x256xi32>
    %14 = arith.xori %11, %13 : vector<8x256xi32>
    %c2146121005_i32 = arith.constant 2146121005 : i32
    %15 = vector.broadcast %c2146121005_i32 : i32 to vector<8x256xi32>
    %16 = arith.muli %14, %15 : vector<8x256xi32>
    %c15_i32 = arith.constant 15 : i32
    %17 = vector.broadcast %c15_i32 : i32 to vector<8x256xi32>
    %18 = arith.shrui %16, %17 : vector<8x256xi32>
    %19 = arith.xori %16, %18 : vector<8x256xi32>
    %c-2073254261_i32 = arith.constant -2073254261 : i32
    %20 = vector.broadcast %c-2073254261_i32 : i32 to vector<8x256xi32>
    %21 = arith.muli %19, %20 : vector<8x256xi32>
    %c16_i32_0 = arith.constant 16 : i32
    %22 = vector.broadcast %c16_i32_0 : i32 to vector<8x256xi32>
    %23 = arith.shrui %21, %22 : vector<8x256xi32>
    %24 = arith.xori %21, %23 : vector<8x256xi32>
    %c8_i32_1 = arith.constant 8 : i32
    %25 = vector.broadcast %c8_i32_1 : i32 to vector<8x256xi32>
    %26 = arith.shrui %24, %25 : vector<8x256xi32>
    %27 = arith.sitofp %26 : vector<8x256xi32> to vector<8x256xf32>
    %cst = arith.constant 5.96046448E-8 : f32
    %28 = vector.broadcast %cst : f32 to vector<8x256xf32>
    %29 = arith.mulf %27, %28 : vector<8x256xf32>
    %c0_2 = arith.constant 0 : index
    %c0_3 = arith.constant 0 : index
    %30 = vector.load %arg2[%c0_2, %c0_3] : memref<8x256xf32, #tpu.memory_space<vmem>>, vector<8x256xf32>
    tpu.vector_store %arg2[%c0_2, %c0_3], %29 {strides = array<i32>} : memref<8x256xf32, #tpu.memory_space<vmem>>, vector<8x256xf32>,
    return
  }
  func.func @transform_0(%arg0: i32, %arg1: memref<1xi32, #tpu.memory_space<smem>>) -> (i32, i32) {
    %c0_i32 = arith.constant 0 : i32
    %c0_i32_0 = arith.constant 0 : i32
    return %arg0, %c0_i32 : i32, i32
  }
}

</mosaic_0001>

<llo_original>
// kernel: tpu_custom_call.1
$region0: #{tpu_custom_call.1}
  #allocation0 [shape = 'u32[]', space=smem, size = 0x4, offset = 0x4, fixed_abs, tag = 'smem constant byte address 0x4 - core index']
  #allocation1 [shape = 'u32[144,128]{1,0:T(1,128)}', space=vmem, size = 0x12000, scoped, tag = 'internal scratch']
  #allocation2 [shape = 's32[1]{0}', space=sflag, size = 0x4, scoped, tag = 'scoped memory for tpu_custom_call.1']
  #allocation3 [shape = 's32[1]{0:T(128)S(6)}', space=smem, size = 0x200, scoped, tag = 'prefetched SMEM operand 0']
  %s0 = inlined_call_operand.<no memory space> [shape: s32[1], index: 0, kind: input, shape index: {}]
  %s1 = inlined_call_operand.hbm [shape: f32[8,256], index: 1, kind: output, shape index: {}]
  %s2 = sld [smem:[#allocation0]]
  $region10: #{tpu_custom_call.1} parent=0
    _
  %s4 = ssub.s32 1, %s2
  %s5 = scalar_select 0, %s4, %s2
  %6 = sst [smem:[#allocation3]] %s0
  $region1: #{tpu_custom_call.1} parent=0
    #allocation4 [shape = 'u8[8192]{0}', space=vmem, size = 0x2000, scoped, tag = 'output window, operand 0, single buffered']
    #allocation5 [shape = 's32[1]{0}', space=sflag, size = 0x4, scoped, tag = 'scoped memory for tpu_custom_call.1']
    %7 = vsyncpa [#allocation5], 0
    %v8 = vlaneseq
    %v9 = vshrl.u32 %v8, 7
    %v10 = vlaneseq
    %v11 = vand.u32 %v10, 127
    %v12 = vadd.s32 %v11, 128
    %s13 = smul.u32 0, 8
    %v14 = vstv %s13
    %v15 = vadd.s32 %v9, %v14
    %v16 = vmul.u32 %v15, 256
    %v17 = vadd.s32 %v16, %v11
    %v18 = vadd.s32 %v16, %v12
    %s19 = sld [smem:[#allocation3]]
    %s20 = smul.u32 %s19, 2654435769
    %v21 = vstv %s20
    %v22 = vxor.u32 %v17, %v21
    %v23 = vxor.u32 %v18, %v21
    %v24 = vshrl.u32 %v22, 16
    %v25 = vshrl.u32 %v23, 16
    %v26 = vxor.u32 %v22, %v24
    %v27 = vxor.u32 %v23, %v25
    %v28 = vmul.u32 %v26, 2146121005
    %v29 = vmul.u32 %v27, 2146121005
    %v30 = vshrl.u32 %v28, 15
    %v31 = vshrl.u32 %v29, 15
    %v32 = vxor.u32 %v28, %v30
    %v33 = vxor.u32 %v29, %v31
    %v34 = vmul.u32 %v32, 2221713035
    %v35 = vmul.u32 %v33, 2221713035
    %v36 = vshrl.u32 %v34, 16
    %v37 = vshrl.u32 %v35, 16
    %v38 = vxor.u32 %v34, %v36
    %v39 = vxor.u32 %v35, %v37
    %v40 = vshrl.u32 %v38, 8
    %v41 = vshrl.u32 %v39, 8
    %v42 = vcvt.s32.f32 %v40
    %v43 = vcvt.s32.f32 %v41
    %v44 = vmul.f32 %v42, 5.9604645e-08
    %v45 = vmul.f32 %v43, 5.9604645e-08
    %46 = vst [vmem:[#allocation4] sm:$0xff] %v44
    %47 = vst [vmem:[#allocation4 + $0x8] sm:$0xff] %v45
    // Predicated region
    $region2: #{tpu_custom_call.1} parent=1 // pred_check
      _
    $region3: #{tpu_custom_call.1} parent=1 // pred_check_branch
      %49 = sbr.rel (0) target = $region5
    $region4: #{tpu_custom_call.1} parent=1 // pred_region
      %s51 = ssub.s32 256, 256
      %52 = vsyncadd [#allocation5], %s51
      %s54 = sshll.u32 [#allocation4], 4
      %s55 = int_to_ptr.vmem [resolvable:$true] %s54
      %57 = dma.vmem_to_hbm [thread:$0]  %s55, 256, %s1, [#allocation5]
    $region5: #{tpu_custom_call.1} parent=1 // pred_fallthru
      _
    // Predicated region
    $region6: #{tpu_custom_call.1} parent=1 // pred_check
      _
    $region7: #{tpu_custom_call.1} parent=1 // pred_check_branch
      %59 = sbr.rel (0) target = $region9
    $region8: #{tpu_custom_call.1} parent=1 // pred_region
      %60 = dma.done [#allocation5], 256
    $region9: #{tpu_custom_call.1} parent=1 // pred_fallthru
      _
    %61 = vsyncpa [#allocation5], 1

</llo_original>
